<compile_context>
chip_gen: v7x
topology: tpu7x:2x2x1
jax: 0.10.0
libtpu: 0.0.40
codegen_flags: <defaults>
</compile_context>

<pallas_src>
import functools

import jax
import jax.numpy as jnp
from jax import lax
from jax.experimental import pallas as pl
from jax.experimental.pallas import tpu as pltpu


def _gdl_block_kernel(gen_ref, gt_ref, mx_ref, my_ref, out_ref, *,
                      n_planes, tp, sub, width):
    """One grid step: partial GDL sum over a (tp, H*W) slab of flat planes."""
    L = gen_ref.shape[1]
    mx = mx_ref[...]                      # (1, L) f32, zero where w == 0
    my = my_ref[...]                      # (1, L) f32, zero where h == 0
    base = pl.program_id(0) * tp
    need_plane_mask = (n_planes % tp) != 0

    def tile_sq(d, row0):
        # d: (rows, L) f32 difference (gt - gen) for `rows` whole planes.
        if need_plane_mask:
            r = lax.broadcasted_iota(jnp.int32, d.shape, 0)
            d = jnp.where(row0 + r < n_planes, d, 0.0)
        # Finite differences via XLU lane rotations + boundary masks; the
        # wrapped-around values land only on masked (w==0 / h==0) positions.
        prev_w = pltpu.roll(d, shift=1, axis=1)
        prev_h = pltpu.roll(d, shift=width, axis=1)
        dx = d - prev_w * mx
        dy = d - prev_h * my
        return dx * dx + dy * dy

    if tp > sub:
        # Stream the block in (sub, L) tiles: bounded temporaries -> big DMA
        # blocks are safe; accumulate elementwise (VPU) and reduce once.
        def body(s, acc):
            off = pl.multiple_of(s * sub, sub)
            g = gen_ref[pl.ds(off, sub), :].astype(jnp.float32)
            t = gt_ref[pl.ds(off, sub), :].astype(jnp.float32)
            return acc + tile_sq(t - g, base + off)

        acc = lax.fori_loop(0, tp // sub, body,
                            jnp.zeros((sub, L), jnp.float32))
        total = jnp.sum(acc)
    else:
        # Small block (tp <= sub): do it in one shot.
        d = gt_ref[...].astype(jnp.float32) - gen_ref[...].astype(jnp.float32)
        total = jnp.sum(tile_sq(d, base))

    # Lane-dense, unmasked per-step store; the tiny cross-block sum is outside.
    out_ref[...] = jnp.full(out_ref.shape, total, dtype=out_ref.dtype)


def gdl_loss_pallas(gen_frames, gt_frames, *, block_planes=None):
    """Pallas TPU equivalent of gdl_loss(gen_frames, gt_frames, alpha=2)."""
    assert gen_frames.shape == gt_frames.shape
    N, C, H, W = gen_frames.shape
    assert C == 3, "GDL filters are defined for exactly 3 channels"
    # TODO(synk): only alpha=2 (the module default) is implemented.

    P = N * C          # number of (H, W) planes
    L = H * W          # lane-dense flattened plane length

    # Flatten planes onto the lane axis; NO dtype cast in the wrapper.
    g = gen_frames.reshape(P, L)
    t = gt_frames.reshape(P, L)
    itemsize = jnp.dtype(gen_frames.dtype).itemsize

    # ---- per-generation VMEM budget & per-input block target -----------------
    try:
        vmem_cap = int(pltpu.get_tpu_info().vmem_capacity_bytes)
    except Exception:  # conservative fallback if the query is unavailable
        vmem_cap = 0
    if vmem_cap >= 100 * 1024 * 1024:          # v5e / v6e: 128 MiB physical VMEM
        vmem_limit = 64 * 1024 * 1024
        target_block = 8 * 1024 * 1024
    else:                                      # v7x (64 MiB physical) or unknown
        vmem_limit = 32 * 1024 * 1024
        target_block = 6 * 1024 * 1024

    # Reserve headroom for the in-kernel streamed temporaries (~6 x (sub, L)
    # f32 tiles, sub capped so one tile is <= ~1 MiB) plus masks and slack.
    sub_bytes_cap = min(1 << 20, 64 * L * 4)
    reserved = 6 * sub_bytes_cap + 2 * L * 4 + (1 << 20)
    avail = max(vmem_limit - reserved, 2 * 1024 * 1024)

    if block_planes is None:
        tp = min(target_block // max(L * itemsize, 1),
                 avail // max(4 * L * itemsize, 1))   # 2 inputs x 2 buffers
        tp = int(max(tp, 1))
    else:
        tp = int(block_planes)

    if P < 8:
        tp = P                                   # full dim -> always legal block
    else:
        tp = max(8, min(tp, P))
        tp = (tp // 8) * 8                       # sublane-aligned block
        if block_planes is None and tp >= P and P >= 16:
            # Guarantee >= 2 grid steps so both v7x TensorCores get work.
            tp = max(8, ((P // 2) // 8) * 8)
    # TODO(synk): when P < 16 but H*W is huge, additionally split the lane axis
    # (with a dy boundary-row correction) so the parallel grid has >= 2 steps.

    G = -(-P // tp)

    # Largest in-kernel sub-tile (multiple of 8 dividing tp, <= ~1 MiB of f32).
    sub = tp if P < 8 else 8
    if P >= 8:
        for cand in (64, 32, 16):
            if tp % cand == 0 and cand * L * 4 <= (1 << 20):
                sub = cand
                break
    assert P < 8 or tp % sub == 0

    # Boundary masks for the flattened planes (computed once, tiny).
    lane = jnp.arange(L, dtype=jnp.int32)
    mx = (lane % W != 0).astype(jnp.float32).reshape(1, L)   # zero at w == 0
    my = (lane >= W).astype(jnp.float32).reshape(1, L)       # zero at h == 0

    kernel = functools.partial(_gdl_block_kernel, n_planes=P, tp=tp, sub=sub,
                               width=W)

    partials = pl.pallas_call(
        kernel,
        out_shape=jax.ShapeDtypeStruct((G, 8, 128), jnp.float32),
        grid=(G,),
        in_specs=[
            pl.BlockSpec((tp, L), lambda i: (i, 0)),
            pl.BlockSpec((tp, L), lambda i: (i, 0)),
            pl.BlockSpec((1, L), lambda i: (0, 0)),
            pl.BlockSpec((1, L), lambda i: (0, 0)),
        ],
        out_specs=pl.BlockSpec((1, 8, 128), lambda i: (i, 0, 0)),
        compiler_params=pltpu.CompilerParams(
            # Each step owns its output block -> safe to shard across cores.
            dimension_semantics=("parallel",),
            vmem_limit_bytes=vmem_limit,
        ),
        cost_estimate=pl.CostEstimate(
            flops=9 * P * L,
            transcendentals=0,
            bytes_accessed=2 * P * L * itemsize + G * 2 * L * 4 + G * 8 * 128 * 4,
        ),
    )(g, t, mx, my)

    n_elems = 2 * N * C * H * W   # mean over stack([grad_diff_x, grad_diff_y])
    return jnp.sum(partials[:, 0, 0]) / jnp.float32(n_elems)


def _gdl_loss_ref(gen_frames, gt_frames):
    """Pure-JAX reference (mirrors the PyTorch math; conv bias cancels)."""
    d = gt_frames.astype(jnp.float32) - gen_frames.astype(jnp.float32)
    d_w = jnp.pad(d, ((0, 0), (0, 0), (0, 0), (1, 0)))[:, :, :, :-1]
    d_h = jnp.pad(d, ((0, 0), (0, 0), (1, 0), (0, 0)))[:, :, :-1, :]
    dx = d - d_w
    dy = d - d_h
    return (jnp.sum(dx * dx) + jnp.sum(dy * dy)) / jnp.float32(2 * d.size)


if __name__ == "__main__":
    key = jax.random.PRNGKey(0)
    k1, k2, k3, k4, k5, k6 = jax.random.split(key, 6)

    # Case 1: small NCHW frames (C=3 required by the fixed GDL filters);
    # exercises the P < 8 single-shot full-block path.
    gen1 = jax.random.normal(k1, (2, 3, 16, 16), dtype=jnp.float32)
    gt1 = jax.random.normal(k2, (2, 3, 16, 16), dtype=jnp.float32)
    loss1 = gdl_loss_pallas(gen1, gt1)
    jax.block_until_ready(loss1)
    ref1 = _gdl_loss_ref(gen1, gt1)
    assert jnp.allclose(loss1, ref1, rtol=1e-4, atol=1e-5), (loss1, ref1)

    # Case 2: explicit block size -> multi-step parallel grid with a partial
    # (masked) last block.
    gen2 = jax.random.normal(k3, (8, 3, 32, 32), dtype=jnp.float32)
    gt2 = jax.random.normal(k4, (8, 3, 32, 32), dtype=jnp.float32)
    loss2 = gdl_loss_pallas(gen2, gt2, block_planes=16)
    jax.block_until_ready(loss2)
    ref2 = _gdl_loss_ref(gen2, gt2)
    assert jnp.allclose(loss2, ref2, rtol=1e-4, atol=1e-5), (loss2, ref2)

    # Case 3: bf16 inputs (native-dtype HBM loads, in-kernel f32 upcast),
    # auto block sizing with the G>=2 split and the in-kernel streaming loop.
    gen3 = jax.random.normal(k5, (16, 3, 64, 64), dtype=jnp.bfloat16)
    gt3 = jax.random.normal(k6, (16, 3, 64, 64), dtype=jnp.bfloat16)
    loss3 = gdl_loss_pallas(gen3, gt3)
    jax.block_until_ready(loss3)
    ref3 = _gdl_loss_ref(gen3, gt3)
    assert jnp.allclose(loss3, ref3, rtol=1e-4, atol=1e-5), (loss3, ref3)

    print("KERNEL_OK")
</pallas_src>

<mosaic_0001>
module attributes {stable_mosaic.version = 11 : i64} {
  func.func @_gdl_block_kernel(%arg0: i32, %arg1: memref<6x256xf32, #tpu.memory_space<vmem>>, %arg2: memref<6x256xf32, #tpu.memory_space<vmem>>, %arg3: memref<1x256xf32, #tpu.memory_space<vmem>>, %arg4: memref<1x256xf32, #tpu.memory_space<vmem>>, %arg5: memref<1x8x128xf32, #tpu.memory_space<vmem>>) attributes {dimension_semantics = [#tpu.dimension_semantics<parallel>], iteration_bounds = array<i64: 1>, scalar_prefetch = 0 : i64, scratch_operands = 0 : i64, tpu.core_type = #tpu.core_type<tc>, window_params = [{transform_indices = @transform_0, window_bounds = array<i64: 6, 256>}, {transform_indices = @transform_1, window_bounds = array<i64: 6, 256>}, {pipeline_mode = #tpu.pipeline_mode<synchronous>, transform_indices = @transform_2, window_bounds = array<i64: 1, 256>}, {pipeline_mode = #tpu.pipeline_mode<synchronous>, transform_indices = @transform_3, window_bounds = array<i64: 1, 256>}, {transform_indices = @transform_4, window_bounds = array<i64: 1, 8, 128>}]} {
    %c0 = arith.constant 0 : index
    %c0_0 = arith.constant 0 : index
    %0 = vector.load %arg3[%c0, %c0_0] : memref<1x256xf32, #tpu.memory_space<vmem>>, vector<1x256xf32>
    %c0_1 = arith.constant 0 : index
    %c0_2 = arith.constant 0 : index
    %1 = vector.load %arg4[%c0_1, %c0_2] : memref<1x256xf32, #tpu.memory_space<vmem>>, vector<1x256xf32>
    %c0_3 = arith.constant 0 : index
    %c0_4 = arith.constant 0 : index
    %2 = vector.load %arg2[%c0_3, %c0_4] : memref<6x256xf32, #tpu.memory_space<vmem>>, vector<6x256xf32>
    %c0_5 = arith.constant 0 : index
    %c0_6 = arith.constant 0 : index
    %3 = vector.load %arg1[%c0_5, %c0_6] : memref<6x256xf32, #tpu.memory_space<vmem>>, vector<6x256xf32>
    %4 = arith.subf %2, %3 : vector<6x256xf32>
    %c1_i32 = arith.constant 1 : i32
    %5 = tpu.dynamic_rotate %4 by %c1_i32 dim 1 : vector<6x256xf32>, i32 -> vector<6x256xf32>
    %c16_i32 = arith.constant 16 : i32
    %6 = tpu.dynamic_rotate %4 by %c16_i32 dim 1 : vector<6x256xf32>, i32 -> vector<6x256xf32>
    %7 = vector.broadcast %0 : vector<1x256xf32> to vector<6x256xf32>
    %8 = arith.mulf %5, %7 : vector<6x256xf32>
    %9 = arith.subf %4, %8 : vector<6x256xf32>
    %10 = vector.broadcast %1 : vector<1x256xf32> to vector<6x256xf32>
    %11 = arith.mulf %6, %10 : vector<6x256xf32>
    %12 = arith.subf %4, %11 : vector<6x256xf32>
    %13 = arith.mulf %9, %9 : vector<6x256xf32>
    %14 = arith.mulf %12, %12 : vector<6x256xf32>
    %15 = arith.addf %13, %14 : vector<6x256xf32>
    %16 = vector.shape_cast %15 : vector<6x256xf32> to vector<1x6x256xf32>
    %cst = arith.constant dense<0.000000e+00> : vector<1xf32>
    %17 = vector.multi_reduction <add>, %16, %cst [1, 2] : vector<1x6x256xf32> to vector<1xf32>
    %18 = vector.shape_cast %17 : vector<1xf32> to vector<1x1x1xf32>
    %19 = vector.extract %18[0, 0, 0] : f32 from vector<1x1x1xf32>
    %20 = vector.broadcast %19 : f32 to vector<1x8x128xf32>
    %c0_7 = arith.constant 0 : index
    %c0_8 = arith.constant 0 : index
    %c0_9 = arith.constant 0 : index
    %21 = vector.load %arg5[%c0_7, %c0_8, %c0_9] : memref<1x8x128xf32, #tpu.memory_space<vmem>>, vector<1x8x128xf32>
    tpu.vector_store %arg5[%c0_7, %c0_8, %c0_9], %20 {strides = array<i32>} : memref<1x8x128xf32, #tpu.memory_space<vmem>>, vector<1x8x128xf32>,
    return
  }
  func.func @transform_0(%arg0: i32) -> (i32, i32) {
    %c0_i32 = arith.constant 0 : i32
    %c0_i32_0 = arith.constant 0 : i32
    return %arg0, %c0_i32 : i32, i32
  }
  func.func @transform_1(%arg0: i32) -> (i32, i32) {
    %c0_i32 = arith.constant 0 : i32
    %c0_i32_0 = arith.constant 0 : i32
    return %arg0, %c0_i32 : i32, i32
  }
  func.func @transform_2(%arg0: i32) -> (i32, i32) {
    %c0_i32 = arith.constant 0 : i32
    %c0_i32_0 = arith.constant 0 : i32
    %c0_i32_1 = arith.constant 0 : i32
    return %c0_i32, %c0_i32_0 : i32, i32
  }
  func.func @transform_3(%arg0: i32) -> (i32, i32) {
    %c0_i32 = arith.constant 0 : i32
    %c0_i32_0 = arith.constant 0 : i32
    %c0_i32_1 = arith.constant 0 : i32
    return %c0_i32, %c0_i32_0 : i32, i32
  }
  func.func @transform_4(%arg0: i32) -> (i32, i32, i32) {
    %c0_i32 = arith.constant 0 : i32
    %c0_i32_0 = arith.constant 0 : i32
    %c0_i32_1 = arith.constant 0 : i32
    return %arg0, %c0_i32, %c0_i32_0 : i32, i32, i32
  }
}

</mosaic_0001>

<llo_original>
// kernel: tpu_custom_call.1
$region0: #{tpu_custom_call.1}
  #allocation0 [shape = 'u32[]', space=smem, size = 0x4, offset = 0x4, fixed_abs, tag = 'smem constant byte address 0x4 - core index']
  #allocation1 [shape = 'u32[144,128]{1,0:T(1,128)}', space=vmem, size = 0x12000, scoped, tag = 'internal scratch']
  %s0 = inlined_call_operand.hbm [shape: f32[6,256], index: 0, kind: input, shape index: {}]
  %s1 = inlined_call_operand.hbm [shape: f32[6,256], index: 1, kind: input, shape index: {}]
  %s2 = inlined_call_operand.vmem [shape: f32[1,256], index: 2, kind: input, shape index: {}]
  %s3 = inlined_call_operand.vmem [shape: f32[1,256], index: 3, kind: input, shape index: {}]
  %s4 = inlined_call_operand.hbm [shape: f32[1,8,128], index: 4, kind: output, shape index: {}]
  %s5 = sld [smem:[#allocation0]]
  $region34: #{tpu_custom_call.1} parent=0
    _
  %s7 = ssub.s32 1, %s5
  %s8 = scalar_select 0, %s7, %s5
  $region1: #{tpu_custom_call.1} parent=0
    #allocation2 [shape = 'u8[8192]{0}', space=vmem, size = 0x2000, scoped, tag = 'input window, operand 0, single buffered']
    #allocation3 [shape = 's32[1]{0}', space=sflag, size = 0x4, scoped, tag = 'scoped memory for tpu_custom_call.1']
    #allocation4 [shape = 's32[1]{0}', space=sflag, size = 0x4, scoped, tag = 'scoped memory for tpu_custom_call.1']
    #allocation5 [shape = 'u8[8192]{0}', space=vmem, size = 0x2000, scoped, tag = 'input window, operand 1, single buffered']
    #allocation6 [shape = 's32[1]{0}', space=sflag, size = 0x4, scoped, tag = 'scoped memory for tpu_custom_call.1']
    #allocation7 [shape = 'u8[4096]{0}', space=vmem, size = 0x1000, scoped, tag = 'output window, operand 0, single buffered']
    %9 = vsyncpa [#allocation3], 0
    %10 = vsyncpa [#allocation6], 0
    %11 = vsyncpa [#allocation4], 0
    // Predicated region
    $region2: #{tpu_custom_call.1} parent=1 // pred_check
      _
    $region3: #{tpu_custom_call.1} parent=1 // pred_check_branch
      %13 = sbr.rel (0) target = $region5
    $region4: #{tpu_custom_call.1} parent=1 // pred_region
      %s15 = ssub.s32 256, 256
      %16 = vsyncadd [#allocation3], %s15
      %s18 = sshll.u32 [#allocation2], 4
      %s19 = int_to_ptr.vmem [resolvable:$true] %s18
      %21 = dma.hbm_to_vmem [thread:$0]  %s0, 256, %s19, [#allocation3]
    $region5: #{tpu_custom_call.1} parent=1 // pred_fallthru
      _
    // Predicated region
    $region6: #{tpu_custom_call.1} parent=1 // pred_check
      _
    $region7: #{tpu_custom_call.1} parent=1 // pred_check_branch
      %23 = sbr.rel (0) target = $region9
    $region8: #{tpu_custom_call.1} parent=1 // pred_region
      %s25 = ssub.s32 256, 256
      %26 = vsyncadd [#allocation6], %s25
      %s28 = sshll.u32 [#allocation5], 4
      %s29 = int_to_ptr.vmem [resolvable:$true] %s28
      %31 = dma.hbm_to_vmem [thread:$0]  %s1, 256, %s29, [#allocation6]
    $region9: #{tpu_custom_call.1} parent=1 // pred_fallthru
      _
    // Predicated region
    $region10: #{tpu_custom_call.1} parent=1 // pred_check
      _
    $region11: #{tpu_custom_call.1} parent=1 // pred_check_branch
      %33 = sbr.rel (0) target = $region13
    $region12: #{tpu_custom_call.1} parent=1 // pred_region
      _
    $region13: #{tpu_custom_call.1} parent=1 // pred_fallthru
      _
    // Predicated region
    $region14: #{tpu_custom_call.1} parent=1 // pred_check
      _
    $region15: #{tpu_custom_call.1} parent=1 // pred_check_branch
      %35 = sbr.rel (0) target = $region17
    $region16: #{tpu_custom_call.1} parent=1 // pred_region
      _
    $region17: #{tpu_custom_call.1} parent=1 // pred_fallthru
      _
    // Predicated region
    $region18: #{tpu_custom_call.1} parent=1 // pred_check
      _
    $region19: #{tpu_custom_call.1} parent=1 // pred_check_branch
      %37 = sbr.rel (0) target = $region21
    $region20: #{tpu_custom_call.1} parent=1 // pred_region
      %38 = dma.done [#allocation3], 256
    $region21: #{tpu_custom_call.1} parent=1 // pred_fallthru
      _
    // Predicated region
    $region22: #{tpu_custom_call.1} parent=1 // pred_check
      _
    $region23: #{tpu_custom_call.1} parent=1 // pred_check_branch
      %40 = sbr.rel (0) target = $region25
    $region24: #{tpu_custom_call.1} parent=1 // pred_region
      %41 = dma.done [#allocation6], 256
    $region25: #{tpu_custom_call.1} parent=1 // pred_fallthru
      _
    %v42 = vld [vmem:[%s2] sm:$0x3]
    %v43 = vld [vmem:[%s3] sm:$0x3]
    %v44 = vld [vmem:[#allocation5] sm:$0x3f]
    %v45 = vld [vmem:[#allocation5 + $0x8] sm:$0x3f]
    %v46 = vld [vmem:[#allocation2] sm:$0x3f]
    %v47 = vld [vmem:[#allocation2 + $0x8] sm:$0x3f]
    %v48 = vsub.f32 %v44, %v46
    %v49 = vsub.f32 %v45, %v47
    %50 = vrot.lane.b32.xlu0 %v48, 1
    %v51 = vpop.permute.xlu0 %50
    %52 = vrot.lane.b32.xlu0 %v49, 1
    %v53 = vpop.permute.xlu0 %52
    %v54 = vlaneseq
    %v55 = vand.u32 %v54, 127
    %vm56 = vcmp.lt.s32.totalorder %v55, 1
    %v57 = vsel %vm56, %v51, %v53
    %v58 = vsel %vm56, %v53, %v51
    %59 = vrot.lane.b32.xlu0 %v48, 16
    %v60 = vpop.permute.xlu0 %59
    %61 = vrot.lane.b32.xlu0 %v49, 16
    %v62 = vpop.permute.xlu0 %61
    %vm63 = vcmp.lt.s32.totalorder %v55, 16
    %v64 = vsel %vm63, %v60, %v62
    %v65 = vsel %vm63, %v62, %v60
    %v67 = vlaneseq
    %v68 = vshrl.u32 %v67, 7
    %v69 = vsub.s32 0, %v68
    %v70 = vrot.slane %v42, %v69
    %v71 = vlaneseq
    %v72 = vshrl.u32 %v71, 7
    %v73 = vsub.s32 1, %v72
    %v74 = vrot.slane %v42, %v73
    %v77 = vmul.f32 %v58, %v70
    %v78 = vmul.f32 %v57, %v74
    %v79 = vsub.f32 %v48, %v77
    %v80 = vsub.f32 %v49, %v78
    %v82 = vlaneseq
    %v83 = vshrl.u32 %v82, 7
    %v84 = vsub.s32 0, %v83
    %v85 = vrot.slane %v43, %v84
    %v86 = vlaneseq
    %v87 = vshrl.u32 %v86, 7
    %v88 = vsub.s32 1, %v87
    %v89 = vrot.slane %v43, %v88
    %v92 = vmul.f32 %v65, %v85
    %v93 = vmul.f32 %v64, %v89
    %v94 = vsub.f32 %v48, %v92
    %v95 = vsub.f32 %v49, %v93
    %v96 = vmul.f32 %v79, %v79
    %v97 = vmul.f32 %v80, %v80
    %v98 = vmul.f32 %v94, %v94
    %v99 = vmul.f32 %v95, %v95
    %v100 = vadd.f32 %v96, %v98
    %v101 = vadd.f32 %v97, %v99
    %vm102 = vcmask 1045504
    %v103 = vsel %vm102, %v100, 0.0
    %v104 = vsel %vm102, %v101, 0.0
    %v105 = vadd.f32 %v103, %v104
    %106 = vadd.xlane.f32.xlu0 %v105
    %v107 = vpop.xlane.xlu0 %106
    %v108 = vrot.slane %v107, 4
    %v109 = vadd.f32 %v107, %v108
    %v110 = vrot.slane %v109, 2
    %v111 = vadd.f32 %v109, %v110
    %v112 = vrot.slane %v111, 1
    %v113 = vadd.f32 %v111, %v112
    %s114 = vtos %v113
    %v115 = vstv %s114
    %116 = vst [vmem:[#allocation7] sm:$0xff] %v115
    // Predicated region
    $region26: #{tpu_custom_call.1} parent=1 // pred_check
      _
    $region27: #{tpu_custom_call.1} parent=1 // pred_check_branch
      %118 = sbr.rel (0) target = $region29
    $region28: #{tpu_custom_call.1} parent=1 // pred_region
      %s120 = ssub.s32 128, 128
      %121 = vsyncadd [#allocation4], %s120
      %s123 = sshll.u32 [#allocation7], 4
      %s124 = int_to_ptr.vmem [resolvable:$true] %s123
      %126 = dma.vmem_to_hbm [thread:$0]  %s124, 128, %s4, [#allocation4]
    $region29: #{tpu_custom_call.1} parent=1 // pred_fallthru
      _
    // Predicated region
    $region30: #{tpu_custom_call.1} parent=1 // pred_check
      _
    $region31: #{tpu_custom_call.1} parent=1 // pred_check_branch
      %128 = sbr.rel (0) target = $region33
    $region32: #{tpu_custom_call.1} parent=1 // pred_region
      %129 = dma.done [#allocation4], 128
    $region33: #{tpu_custom_call.1} parent=1 // pred_fallthru
      _
    %130 = vsyncpa [#allocation3], 1
    %131 = vsyncpa [#allocation6], 1
    %132 = vsyncpa [#allocation4], 1

</llo_original>
